<compile_context>
chip_gen: v7x
topology: tpu7x:2x2x1
jax: 0.10.0
libtpu: 0.0.40
codegen_flags: <defaults>
</compile_context>

<pallas_src>
import jax
import jax.numpy as jnp
from jax import lax
from jax.experimental import pallas as pl
from jax.experimental.pallas import tpu as pltpu


def qnet_kernel(s_ref, a_ref, w1s_ref, w1a_ref, b1_ref, w2_ref, b2_ref,
                w3_ref, b3_ref, o_ref):
    wdt = w1s_ref.dtype
    s = s_ref[...].astype(wdt)
    a = a_ref[...].astype(wdt)

    # Layer 1: cat([state, action]) @ W1 == state @ W1_s + action @ W1_a.
    # (K=24 underfills the MXU but layer 1 is <15% of FLOPs; padding would only
    #  add VPU/DMA work.)
    h1 = (jnp.dot(s, w1s_ref[...], preferred_element_type=jnp.float32)
          + jnp.dot(a, w1a_ref[...], preferred_element_type=jnp.float32)
          + b1_ref[...])
    h1 = jnp.maximum(h1, 0.0)

    # Layer 2: bf16 operands, f32 accumulation; bias add / ReLU stay f32 (v5e
    # VPU has no bf16).
    h2 = (jnp.dot(h1.astype(wdt), w2_ref[...],
                  preferred_element_type=jnp.float32)
          + b2_ref[...])
    h2 = jnp.maximum(h2, 0.0)

    # Layer 3 (out_features == 1): contract over H so the per-tile result is a
    # lane-dense (1, tm) row (full unmasked vector stores + dense writeback DMA)
    # instead of a (tm, 1) column of masked stores.  b3 is a scalar from SMEM.
    q_row = lax.dot_general(
        w3_ref[...], h2,
        dimension_numbers=(((1,), (1,)), ((), ())),
        preferred_element_type=jnp.float32)          # (1, tm)
    o_ref[...] = q_row + b3_ref[0, 0]


def _round_up(x, m):
    return ((x + m - 1) // m) * m


def qnetwork_forward(state, action, params, *, tile_m=2048):
    """state: (B, state_size) f32, action: (B, action_size) f32 -> (B, 1) f32."""
    w1_s, w1_a, b1, w2, b2, w3, b3 = params
    B, S = state.shape
    A = action.shape[1]
    H = b1.shape[1]

    # Batch tile:
    #  * large (default 2048) so the ~0.35us fixed per-grid-step cost is
    #    amortized over real MXU work,
    #  * a multiple of 128 so the (1, tm) output row is lane-dense,
    #  * capped at ceil(B/2) (rounded up) so batches bigger than one tile keep
    #    >=2 grid steps and both v7x TensorCores get work via "parallel",
    #  * default 2048 (<=4096) keeps peak VMEM ~<10 MiB, inside the 32 MiB
    #    scoped default on every chip, so no vmem_limit_bytes is required.
    tm = max(128, min(tile_m, _round_up(pl.cdiv(B, 2), 128)))
    num_tiles = pl.cdiv(B, tm)
    B_pad = num_tiles * tm

    if B_pad != B:
        # Rows are independent; padded rows compute junk that is sliced off.
        state = jnp.pad(state, ((0, B_pad - B), (0, 0)))
        action = jnp.pad(action, ((0, B_pad - B), (0, 0)))

    batch_spec = lambda d: pl.BlockSpec((tm, d), lambda i: (i, 0))
    resident = lambda r, c: pl.BlockSpec((r, c), lambda i: (0, 0))  # VMEM-resident

    d_in = S + A
    flops = 2 * B_pad * (d_in * H + H * H + H)
    bytes_accessed = (state.nbytes + action.nbytes + B_pad * 4
                      + w1_s.nbytes + w1_a.nbytes + b1.nbytes
                      + w2.nbytes + b2.nbytes + w3.nbytes + b3.nbytes)

    out = pl.pallas_call(
        qnet_kernel,
        out_shape=jax.ShapeDtypeStruct((num_tiles, tm), jnp.float32),
        grid=(num_tiles,),
        in_specs=[
            batch_spec(S),          # state   (tm, S)
            batch_spec(A),          # action  (tm, A)
            resident(S, H),         # w1_s    (bf16)
            resident(A, H),         # w1_a    (bf16)
            resident(1, H),         # b1      (f32)
            resident(H, H),         # w2      (bf16)
            resident(1, H),         # b2      (f32)
            resident(1, H),         # w3 row  (f32)
            pl.BlockSpec(memory_space=pltpu.MemorySpace.SMEM),  # b3 scalar
        ],
        out_specs=pl.BlockSpec((1, tm), lambda i: (i, 0)),  # lane-dense row/tile
        compiler_params=pltpu.CompilerParams(
            dimension_semantics=("parallel",)),
        cost_estimate=pl.CostEstimate(
            flops=flops, transcendentals=0, bytes_accessed=bytes_accessed),
    )(state, action, w1_s, w1_a, b1, w2, b2, w3, b3)

    # (num_tiles, tm) lane-dense rows -> (B, 1)
    return out.reshape(-1)[:B].reshape(B, 1)
    # TODO(synk): for RL training loops, fuse multiple critics / target nets into
    # one pallas_call (stacked weights) to amortize the per-launch overhead.


def init_params(key, state_size, action_size, hidden=256, init_w=0.003,
                w_dtype=jnp.bfloat16):
    """Mirrors the PyTorch module's shapes/init; W1 stored pre-split (state|action)."""
    k = jax.random.split(key, 7)

    def uniform(kk, shape, bound):
        return jax.random.uniform(kk, shape, jnp.float32, -bound, bound)

    d_in = state_size + action_size
    bnd1 = 1.0 / (d_in ** 0.5)       # nn.Linear default: U(-1/sqrt(fan_in), .)
    bnd2 = 1.0 / (hidden ** 0.5)

    w1_s = uniform(k[0], (state_size, hidden), bnd1).astype(w_dtype)
    w1_a = uniform(k[1], (action_size, hidden), bnd1).astype(w_dtype)
    b1 = uniform(k[2], (1, hidden), bnd1)
    w2 = uniform(k[3], (hidden, hidden), bnd2).astype(w_dtype)
    b2 = uniform(k[4], (1, hidden), bnd2)
    # linear3: explicit U(-init_w, init_w); stored as a (1, H) row
    # (== torch weight of shape (1, H)).
    w3 = uniform(k[5], (1, hidden), init_w)
    b3 = uniform(k[6], (1, 1), init_w)
    return (w1_s, w1_a, b1, w2, b2, w3, b3)


if __name__ == "__main__":
    state_size, action_size, hidden, batch = 16, 8, 256, 8
    key = jax.random.PRNGKey(0)
    k_params, k_state, k_action = jax.random.split(key, 3)

    params = init_params(k_params, state_size, action_size, hidden)
    state = jax.random.normal(k_state, (batch, state_size), jnp.float32)
    action = jax.random.normal(k_action, (batch, action_size), jnp.float32)

    out = qnetwork_forward(state, action, params)
    out = jax.block_until_ready(out)
    assert out.shape == (batch, 1)

    w1_s, w1_a, b1, w2, b2, w3, b3 = params

    # Reference 1: same bf16-operand / f32-accumulate math as the kernel,
    # written with the original concat to verify the module semantics.
    x16 = jnp.concatenate([state, action], axis=1).astype(jnp.bfloat16)
    w1_full = jnp.concatenate([w1_s, w1_a], axis=0)
    r = jnp.maximum(
        jnp.dot(x16, w1_full, preferred_element_type=jnp.float32) + b1, 0.0)
    r = jnp.maximum(
        jnp.dot(r.astype(jnp.bfloat16), w2, preferred_element_type=jnp.float32) + b2,
        0.0)
    ref_bf16 = jnp.sum(r * w3, axis=-1, keepdims=True) + b3
    assert jnp.allclose(out, ref_bf16, atol=5e-4, rtol=1e-3)

    # Reference 2: full-f32 forward; bf16 matmul operands should stay well within
    # this tolerance at these magnitudes.
    xf = jnp.concatenate([state, action], axis=1)
    rf = jnp.maximum(xf @ w1_full.astype(jnp.float32) + b1, 0.0)
    rf = jnp.maximum(rf @ w2.astype(jnp.float32) + b2, 0.0)
    ref_f32 = rf @ w3.T + b3
    assert jnp.allclose(out, ref_f32, atol=1e-3, rtol=5e-2)

    print("KERNEL_OK")
</pallas_src>

<mosaic_0001>
module attributes {stable_mosaic.version = 11 : i64} {
  func.func @qnet_kernel(%arg0: i32, %arg1: memref<128x16xf32, #tpu.memory_space<vmem>>, %arg2: memref<128x8xf32, #tpu.memory_space<vmem>>, %arg3: memref<16x256xbf16, #tpu.memory_space<vmem>>, %arg4: memref<8x256xbf16, #tpu.memory_space<vmem>>, %arg5: memref<1x256xf32, #tpu.memory_space<vmem>>, %arg6: memref<256x256xbf16, #tpu.memory_space<vmem>>, %arg7: memref<1x256xf32, #tpu.memory_space<vmem>>, %arg8: memref<1x256xf32, #tpu.memory_space<vmem>>, %arg9: memref<1x1xf32, #tpu.memory_space<smem>>, %arg10: memref<1x128xf32, #tpu.memory_space<vmem>>) attributes {dimension_semantics = [#tpu.dimension_semantics<parallel>], iteration_bounds = array<i64: 1>, scalar_prefetch = 0 : i64, scratch_operands = 0 : i64, tpu.core_type = #tpu.core_type<tc>, window_params = [{transform_indices = @transform_0, window_bounds = array<i64: 128, 16>}, {transform_indices = @transform_1, window_bounds = array<i64: 128, 8>}, {pipeline_mode = #tpu.pipeline_mode<synchronous>, transform_indices = @transform_2, window_bounds = array<i64: 16, 256>}, {pipeline_mode = #tpu.pipeline_mode<synchronous>, transform_indices = @transform_3, window_bounds = array<i64: 8, 256>}, {pipeline_mode = #tpu.pipeline_mode<synchronous>, transform_indices = @transform_4, window_bounds = array<i64: 1, 256>}, {pipeline_mode = #tpu.pipeline_mode<synchronous>, transform_indices = @transform_5, window_bounds = array<i64: 256, 256>}, {pipeline_mode = #tpu.pipeline_mode<synchronous>, transform_indices = @transform_6, window_bounds = array<i64: 1, 256>}, {pipeline_mode = #tpu.pipeline_mode<synchronous>, transform_indices = @transform_7, window_bounds = array<i64: 1, 256>}, {transform_indices = @transform_8, window_bounds = array<i64: 1, 1>}, {transform_indices = @transform_9, window_bounds = array<i64: 1, 128>}]} {
    %c0 = arith.constant 0 : index
    %c0_0 = arith.constant 0 : index
    %0 = vector.load %arg1[%c0, %c0_0] : memref<128x16xf32, #tpu.memory_space<vmem>>, vector<128x16xf32>
    %1 = arith.truncf %0 : vector<128x16xf32> to vector<128x16xbf16>
    %c0_1 = arith.constant 0 : index
    %c0_2 = arith.constant 0 : index
    %2 = vector.load %arg2[%c0_1, %c0_2] : memref<128x8xf32, #tpu.memory_space<vmem>>, vector<128x8xf32>
    %3 = arith.truncf %2 : vector<128x8xf32> to vector<128x8xbf16>
    %c0_3 = arith.constant 0 : index
    %c0_4 = arith.constant 0 : index
    %4 = vector.load %arg3[%c0_3, %c0_4] : memref<16x256xbf16, #tpu.memory_space<vmem>>, vector<16x256xbf16>
    %cst = arith.constant dense<0.000000e+00> : vector<128x256xf32>
    %5 = tpu.matmul %1, %4, %cst {dimension_numbers = #tpu.dot_dimension_numbers<[1], [0], [0], [1], [0, 0, 1, 1], [], []>} : vector<128x16xbf16>, vector<16x256xbf16>, vector<128x256xf32> -> vector<128x256xf32>
    %c0_5 = arith.constant 0 : index
    %c0_6 = arith.constant 0 : index
    %6 = vector.load %arg4[%c0_5, %c0_6] : memref<8x256xbf16, #tpu.memory_space<vmem>>, vector<8x256xbf16>
    %cst_7 = arith.constant dense<0.000000e+00> : vector<128x256xf32>
    %7 = tpu.matmul %3, %6, %cst_7 {dimension_numbers = #tpu.dot_dimension_numbers<[1], [0], [0], [1], [0, 0, 1, 1], [], []>} : vector<128x8xbf16>, vector<8x256xbf16>, vector<128x256xf32> -> vector<128x256xf32>
    %8 = arith.addf %5, %7 : vector<128x256xf32>
    %c0_8 = arith.constant 0 : index
    %c0_9 = arith.constant 0 : index
    %9 = vector.load %arg5[%c0_8, %c0_9] : memref<1x256xf32, #tpu.memory_space<vmem>>, vector<1x256xf32>
    %10 = vector.broadcast %9 : vector<1x256xf32> to vector<128x256xf32>
    %11 = arith.addf %8, %10 : vector<128x256xf32>
    %cst_10 = arith.constant 0.000000e+00 : f32
    %12 = vector.broadcast %cst_10 : f32 to vector<128x256xf32>
    %13 = arith.maximumf %11, %12 : vector<128x256xf32>
    %14 = arith.truncf %13 : vector<128x256xf32> to vector<128x256xbf16>
    %c0_11 = arith.constant 0 : index
    %c0_12 = arith.constant 0 : index
    %15 = vector.load %arg6[%c0_11, %c0_12] : memref<256x256xbf16, #tpu.memory_space<vmem>>, vector<256x256xbf16>
    %cst_13 = arith.constant dense<0.000000e+00> : vector<128x256xf32>
    %16 = tpu.matmul %14, %15, %cst_13 {dimension_numbers = #tpu.dot_dimension_numbers<[1], [0], [0], [1], [0, 0, 1, 1], [], []>} : vector<128x256xbf16>, vector<256x256xbf16>, vector<128x256xf32> -> vector<128x256xf32>
    %c0_14 = arith.constant 0 : index
    %c0_15 = arith.constant 0 : index
    %17 = vector.load %arg7[%c0_14, %c0_15] : memref<1x256xf32, #tpu.memory_space<vmem>>, vector<1x256xf32>
    %18 = vector.broadcast %17 : vector<1x256xf32> to vector<128x256xf32>
    %19 = arith.addf %16, %18 : vector<128x256xf32>
    %cst_16 = arith.constant 0.000000e+00 : f32
    %20 = vector.broadcast %cst_16 : f32 to vector<128x256xf32>
    %21 = arith.maximumf %19, %20 : vector<128x256xf32>
    %c0_17 = arith.constant 0 : index
    %c0_18 = arith.constant 0 : index
    %22 = vector.load %arg8[%c0_17, %c0_18] : memref<1x256xf32, #tpu.memory_space<vmem>>, vector<1x256xf32>
    %cst_19 = arith.constant dense<0.000000e+00> : vector<1x128xf32>
    %23 = tpu.matmul %22, %21, %cst_19 {dimension_numbers = #tpu.dot_dimension_numbers<[1], [1], [0], [0], [0, 0, 1, 0], [], []>} : vector<1x256xf32>, vector<128x256xf32>, vector<1x128xf32> -> vector<1x128xf32>
    %c0_20 = arith.constant 0 : index
    %c0_21 = arith.constant 0 : index
    %24 = memref.load %arg9[%c0_20, %c0_21] : memref<1x1xf32, #tpu.memory_space<smem>>
    %25 = vector.broadcast %24 : f32 to vector<1x128xf32>
    %26 = arith.addf %23, %25 : vector<1x128xf32>
    %c0_22 = arith.constant 0 : index
    %c0_23 = arith.constant 0 : index
    %27 = vector.load %arg10[%c0_22, %c0_23] : memref<1x128xf32, #tpu.memory_space<vmem>>, vector<1x128xf32>
    tpu.vector_store %arg10[%c0_22, %c0_23], %26 {strides = array<i32>} : memref<1x128xf32, #tpu.memory_space<vmem>>, vector<1x128xf32>,
    return
  }
  func.func @transform_0(%arg0: i32) -> (i32, i32) {
    %c0_i32 = arith.constant 0 : i32
    %c0_i32_0 = arith.constant 0 : i32
    return %arg0, %c0_i32 : i32, i32
  }
  func.func @transform_1(%arg0: i32) -> (i32, i32) {
    %c0_i32 = arith.constant 0 : i32
    %c0_i32_0 = arith.constant 0 : i32
    return %arg0, %c0_i32 : i32, i32
  }
  func.func @transform_2(%arg0: i32) -> (i32, i32) {
    %c0_i32 = arith.constant 0 : i32
    %c0_i32_0 = arith.constant 0 : i32
    %c0_i32_1 = arith.constant 0 : i32
    return %c0_i32, %c0_i32_0 : i32, i32
  }
  func.func @transform_3(%arg0: i32) -> (i32, i32) {
    %c0_i32 = arith.constant 0 : i32
    %c0_i32_0 = arith.constant 0 : i32
    %c0_i32_1 = arith.constant 0 : i32
    return %c0_i32, %c0_i32_0 : i32, i32
  }
  func.func @transform_4(%arg0: i32) -> (i32, i32) {
    %c0_i32 = arith.constant 0 : i32
    %c0_i32_0 = arith.constant 0 : i32
    %c0_i32_1 = arith.constant 0 : i32
    return %c0_i32, %c0_i32_0 : i32, i32
  }
  func.func @transform_5(%arg0: i32) -> (i32, i32) {
    %c0_i32 = arith.constant 0 : i32
    %c0_i32_0 = arith.constant 0 : i32
    %c0_i32_1 = arith.constant 0 : i32
    return %c0_i32, %c0_i32_0 : i32, i32
  }
  func.func @transform_6(%arg0: i32) -> (i32, i32) {
    %c0_i32 = arith.constant 0 : i32
    %c0_i32_0 = arith.constant 0 : i32
    %c0_i32_1 = arith.constant 0 : i32
    return %c0_i32, %c0_i32_0 : i32, i32
  }
  func.func @transform_7(%arg0: i32) -> (i32, i32) {
    %c0_i32 = arith.constant 0 : i32
    %c0_i32_0 = arith.constant 0 : i32
    %c0_i32_1 = arith.constant 0 : i32
    return %c0_i32, %c0_i32_0 : i32, i32
  }
  func.func @transform_8(%arg0: i32) -> (i32, i32) {
    %c0_i32 = arith.constant 0 : i32
    %c0_i32_0 = arith.constant 0 : i32
    %c0_i32_1 = arith.constant 0 : i32
    return %c0_i32, %c0_i32_0 : i32, i32
  }
  func.func @transform_9(%arg0: i32) -> (i32, i32) {
    %c0_i32 = arith.constant 0 : i32
    %c0_i32_0 = arith.constant 0 : i32
    return %arg0, %c0_i32 : i32, i32
  }
}

</mosaic_0001>

<llo_original>
// kernel: tpu_custom_call.1
$region0: #{tpu_custom_call.1}
  #allocation0 [shape = 'u32[]', space=smem, size = 0x4, offset = 0x4, fixed_abs, tag = 'smem constant byte address 0x4 - core index']
  #allocation1 [shape = 'u32[144,128]{1,0:T(1,128)}', space=vmem, size = 0x12000, scoped, tag = 'internal scratch']
  #allocation2 [shape = 'f32[1,1]{1,0:T(1,128)S(6)}', space=smem, size = 0x200, scoped, tag = 'scoped memory for tpu_custom_call.1']
  %s0 = inlined_call_operand.vmem [shape: f32[128,16], index: 0, kind: input, shape index: {}]
  %s1 = inlined_call_operand.vmem [shape: f32[128,8], index: 1, kind: input, shape index: {}]
  %s2 = inlined_call_operand.vmem [shape: bf16[16,256], index: 2, kind: input, shape index: {}]
  %s3 = inlined_call_operand.vmem [shape: bf16[8,256], index: 3, kind: input, shape index: {}]
  %s4 = inlined_call_operand.vmem [shape: f32[1,256], index: 4, kind: input, shape index: {}]
  %s5 = inlined_call_operand.vmem [shape: bf16[256,256], index: 5, kind: input, shape index: {}]
  %s6 = inlined_call_operand.vmem [shape: f32[1,256], index: 6, kind: input, shape index: {}]
  %s7 = inlined_call_operand.vmem [shape: f32[1,256], index: 7, kind: input, shape index: {}]
  %s8 = inlined_call_operand.<no memory space> [shape: f32[1,1], index: 8, kind: input, shape index: {}]
  %s9 = inlined_call_operand.hbm [shape: f32[1,128], index: 9, kind: output, shape index: {}]
  %s10 = sld [smem:[#allocation0]]
  $region46: #{tpu_custom_call.1} parent=0
    _
  %s12 = ssub.s32 1, %s10
  %s13 = scalar_select 0, %s12, %s10
  %14 = sst [smem:[#allocation2]] %s8
  $region1: #{tpu_custom_call.1} parent=0
    #allocation3 [shape = 'u8[512]{0}', space=vmem, size = 0x400, scoped, tag = 'output window, operand 0, single buffered']
    #allocation4 [shape = 's32[1]{0}', space=sflag, size = 0x4, scoped, tag = 'scoped memory for tpu_custom_call.1']
    %15 = vsyncpa [#allocation4], 0
    // Predicated region
    $region2: #{tpu_custom_call.1} parent=1 // pred_check
      _
    $region3: #{tpu_custom_call.1} parent=1 // pred_check_branch
      %17 = sbr.rel (0) target = $region5
    $region4: #{tpu_custom_call.1} parent=1 // pred_region
      _
    $region5: #{tpu_custom_call.1} parent=1 // pred_fallthru
      _
    // Predicated region
    $region6: #{tpu_custom_call.1} parent=1 // pred_check
      _
    $region7: #{tpu_custom_call.1} parent=1 // pred_check_branch
      %19 = sbr.rel (0) target = $region9
    $region8: #{tpu_custom_call.1} parent=1 // pred_region
      _
    $region9: #{tpu_custom_call.1} parent=1 // pred_fallthru
      _
    // Predicated region
    $region10: #{tpu_custom_call.1} parent=1 // pred_check
      _
    $region11: #{tpu_custom_call.1} parent=1 // pred_check_branch
      %21 = sbr.rel (0) target = $region13
    $region12: #{tpu_custom_call.1} parent=1 // pred_region
      _
    $region13: #{tpu_custom_call.1} parent=1 // pred_fallthru
      _
    // Predicated region
    $region14: #{tpu_custom_call.1} parent=1 // pred_check
      _
    $region15: #{tpu_custom_call.1} parent=1 // pred_check_branch
      %23 = sbr.rel (0) target = $region17
    $region16: #{tpu_custom_call.1} parent=1 // pred_region
      _
    $region17: #{tpu_custom_call.1} parent=1 // pred_fallthru
      _
    // Predicated region
    $region18: #{tpu_custom_call.1} parent=1 // pred_check
      _
    $region19: #{tpu_custom_call.1} parent=1 // pred_check_branch
      %25 = sbr.rel (0) target = $region21
    $region20: #{tpu_custom_call.1} parent=1 // pred_region
      _
    $region21: #{tpu_custom_call.1} parent=1 // pred_fallthru
      _
    // Predicated region
    $region22: #{tpu_custom_call.1} parent=1 // pred_check
      _
    $region23: #{tpu_custom_call.1} parent=1 // pred_check_branch
      %27 = sbr.rel (0) target = $region25
    $region24: #{tpu_custom_call.1} parent=1 // pred_region
      _
    $region25: #{tpu_custom_call.1} parent=1 // pred_fallthru
      _
    // Predicated region
    $region26: #{tpu_custom_call.1} parent=1 // pred_check
      _
    $region27: #{tpu_custom_call.1} parent=1 // pred_check_branch
      %29 = sbr.rel (0) target = $region29
    $region28: #{tpu_custom_call.1} parent=1 // pred_region
      _
    $region29: #{tpu_custom_call.1} parent=1 // pred_fallthru
      _
    // Predicated region
    $region30: #{tpu_custom_call.1} parent=1 // pred_check
      _
    $region31: #{tpu_custom_call.1} parent=1 // pred_check_branch
      %31 = sbr.rel (0) target = $region33
    $region32: #{tpu_custom_call.1} parent=1 // pred_region
      _
    $region33: #{tpu_custom_call.1} parent=1 // pred_fallthru
      _
    // Predicated region
    $region34: #{tpu_custom_call.1} parent=1 // pred_check
      _
    $region35: #{tpu_custom_call.1} parent=1 // pred_check_branch
      %33 = sbr.rel (0) target = $region37
    $region36: #{tpu_custom_call.1} parent=1 // pred_region
      _
    $region37: #{tpu_custom_call.1} parent=1 // pred_fallthru
      _
    %v35 = vld [vmem:[%s0] sm:$0xff]
    %v36 = vld [vmem:[%s0 + $0x8] sm:$0xff]
    %v37 = vld [vmem:[%s0 + $0x10] sm:$0xff]
    %v38 = vld [vmem:[%s0 + $0x18] sm:$0xff]
    %v39 = vld [vmem:[%s0 + $0x20] sm:$0xff]
    %v40 = vld [vmem:[%s0 + $0x28] sm:$0xff]
    %v41 = vld [vmem:[%s0 + $0x30] sm:$0xff]
    %v42 = vld [vmem:[%s0 + $0x38] sm:$0xff]
    %v43 = vld [vmem:[%s0 + $0x40] sm:$0xff]
    %v44 = vld [vmem:[%s0 + $0x48] sm:$0xff]
    %v45 = vld [vmem:[%s0 + $0x50] sm:$0xff]
    %v46 = vld [vmem:[%s0 + $0x58] sm:$0xff]
    %v47 = vld [vmem:[%s0 + $0x60] sm:$0xff]
    %v48 = vld [vmem:[%s0 + $0x68] sm:$0xff]
    %v49 = vld [vmem:[%s0 + $0x70] sm:$0xff]
    %v50 = vld [vmem:[%s0 + $0x78] sm:$0xff]
    %v51 = vpack.c.bf16 %v36, %v35
    %v52 = vpack.c.bf16 %v38, %v37
    %v53 = vpack.c.bf16 %v40, %v39
    %v54 = vpack.c.bf16 %v42, %v41
    %v55 = vpack.c.bf16 %v44, %v43
    %v56 = vpack.c.bf16 %v46, %v45
    %v57 = vpack.c.bf16 %v48, %v47
    %v58 = vpack.c.bf16 %v50, %v49
    %v59 = vld [vmem:[%s1] sm:$0xff]
    %v60 = vld [vmem:[%s1 + $0x8] sm:$0xff]
    %v61 = vld [vmem:[%s1 + $0x10] sm:$0xff]
    %v62 = vld [vmem:[%s1 + $0x18] sm:$0xff]
    %v63 = vld [vmem:[%s1 + $0x20] sm:$0xff]
    %v64 = vld [vmem:[%s1 + $0x28] sm:$0xff]
    %v65 = vld [vmem:[%s1 + $0x30] sm:$0xff]
    %v66 = vld [vmem:[%s1 + $0x38] sm:$0xff]
    %v67 = vld [vmem:[%s1 + $0x40] sm:$0xff]
    %v68 = vld [vmem:[%s1 + $0x48] sm:$0xff]
    %v69 = vld [vmem:[%s1 + $0x50] sm:$0xff]
    %v70 = vld [vmem:[%s1 + $0x58] sm:$0xff]
    %v71 = vld [vmem:[%s1 + $0x60] sm:$0xff]
    %v72 = vld [vmem:[%s1 + $0x68] sm:$0xff]
    %v73 = vld [vmem:[%s1 + $0x70] sm:$0xff]
    %v74 = vld [vmem:[%s1 + $0x78] sm:$0xff]
    %v75 = vpack.c.bf16 %v60, %v59
    %v76 = vpack.c.bf16 %v62, %v61
    %v77 = vpack.c.bf16 %v64, %v63
    %v78 = vpack.c.bf16 %v66, %v65
    %v79 = vpack.c.bf16 %v68, %v67
    %v80 = vpack.c.bf16 %v70, %v69
    %v81 = vpack.c.bf16 %v72, %v71
    %v82 = vpack.c.bf16 %v74, %v73
    %v83 = vld [vmem:[%s2] sm:$0xff]
    %v84 = vld [vmem:[%s2 + $0x8] sm:$0xff]
    %v85 = vld [vmem:[%s3] sm:$0xff]
    %v87 = vunpack.c.l.b16 %v85
    %v88 = vunpack.c.h.b16 %v85
    %v89 = vpack.c.b16 %v87, %v87
    %v90 = vpack.c.b16 %v88, %v88
    %vm91 = vcmask 64512
    %v93 = vsel %vm91, %v75, 0
    %v96 = vsel %vm91, %v76, 0
    %v99 = vsel %vm91, %v77, 0
    %v102 = vsel %vm91, %v78, 0
    %v105 = vsel %vm91, %v79, 0
    %v108 = vsel %vm91, %v80, 0
    %v111 = vsel %vm91, %v81, 0
    %v114 = vsel %vm91, %v82, 0
    %vm116 = vcmask 1043456
    %v118 = vsel %vm116, %v89, 0
    %v121 = vsel %vm116, %v90, 0
    %123 = vmatprep.subr.bf16.mxu0 %v121
    %124 = vmatpush1.bf16.msra.mxu0 %v118
    %125 = vmatprep.subr.bf16.mxu0 0
    %126 = vmatpush1.bf16.msra.mxu0 0
    %127 = vmatprep.subr.bf16.mxu0 0
    %128 = vmatpush1.bf16.msra.mxu0 0
    %129 = vmatprep.subr.bf16.mxu0 0
    %130 = vmatpush1.bf16.msra.mxu0 0
    %131 = vmatprep.subr.bf16.mxu0 0
    %132 = vmatpush1.bf16.msra.mxu0 0
    %133 = vmatprep.subr.bf16.mxu0 0
    %134 = vmatpush1.bf16.msra.mxu0 0
    %135 = vmatprep.subr.bf16.mxu0 0
    %136 = vmatpush1.bf16.msra.mxu0 0
    %137 = vmatprep.subr.bf16.mxu0 0
    %138 = vmatpush1.bf16.msra.mxu0 0
    %139 = vmatprep.subr.bf16.mxu0 0
    %140 = vmatpush1.bf16.msra.mxu0 0
    %141 = vmatprep.subr.bf16.mxu0 0
    %142 = vmatpush1.bf16.msra.mxu0 0
    %143 = vmatprep.subr.bf16.mxu0 0
    %144 = vmatpush1.bf16.msra.mxu0 0
    %145 = vmatprep.subr.bf16.mxu0 0
    %146 = vmatpush1.bf16.msra.mxu0 0
    %147 = vmatprep.subr.bf16.mxu0 0
    %148 = vmatpush1.bf16.msra.mxu0 0
    %149 = vmatprep.subr.bf16.mxu0 0
    %150 = vmatpush1.bf16.msra.mxu0 0
    %151 = vmatprep.subr.bf16.mxu0 0
    %152 = vmatpush1.bf16.msra.mxu0 0
    %153 = vmatprep.subr.bf16.mxu0 0
    %154 = vmatpush1.bf16.msra.mxu0 0
    %155 = vmatprep.mubr.bf16.mxu0 0
    %156 = vmatmul.mubr.bf16.gmra.mrb[0].mxu0 %v93
    %v157 = vpop.f32.mrb[0].mxu0
    %v158 = vadd.f32 0.0, %v157
    %v159 = vpop.f32.mrb[0].mxu0
    %v160 = vadd.f32 0.0, %v159
    %v161 = vpop.f32.mrb[0].mxu0
    %v162 = vadd.f32 0.0, %v161
    %v163 = vpop.f32.mrb[0].mxu0
    %v164 = vadd.f32 0.0, %v163
    %165 = vmatprep.mubr.bf16.mxu0 0
    %166 = vmatmul.mubr.bf16.gmra.mrb[0].mxu0 %v96
    %v167 = vpop.f32.mrb[0].mxu0
    %v168 = vadd.f32 0.0, %v167
    %v169 = vpop.f32.mrb[0].mxu0
    %v170 = vadd.f32 0.0, %v169
    %v171 = vpop.f32.mrb[0].mxu0
    %v172 = vadd.f32 0.0, %v171
    %v173 = vpop.f32.mrb[0].mxu0
    %v174 = vadd.f32 0.0, %v173
    %175 = vmatprep.mubr.bf16.mxu0 0
    %176 = vmatmul.mubr.bf16.gmra.mrb[0].mxu0 %v99
    %v177 = vpop.f32.mrb[0].mxu0
    %v178 = vadd.f32 0.0, %v177
    %v179 = vpop.f32.mrb[0].mxu0
    %v180 = vadd.f32 0.0, %v179
    %v181 = vpop.f32.mrb[0].mxu0
    %v182 = vadd.f32 0.0, %v181
    %v183 = vpop.f32.mrb[0].mxu0
    %v184 = vadd.f32 0.0, %v183
    %185 = vmatprep.mubr.bf16.mxu0 0
    %186 = vmatmul.mubr.bf16.gmra.mrb[0].mxu0 %v102
    %v187 = vpop.f32.mrb[0].mxu0
    %v188 = vadd.f32 0.0, %v187
    %v189 = vpop.f32.mrb[0].mxu0
    %v190 = vadd.f32 0.0, %v189
    %v191 = vpop.f32.mrb[0].mxu0
    %v192 = vadd.f32 0.0, %v191
    %v193 = vpop.f32.mrb[0].mxu0
    %v194 = vadd.f32 0.0, %v193
    %195 = vmatprep.mubr.bf16.mxu0 0
    %196 = vmatmul.mubr.bf16.gmra.mrb[0].mxu0 %v105
    %v197 = vpop.f32.mrb[0].mxu0
    %v198 = vadd.f32 0.0, %v197
    %v199 = vpop.f32.mrb[0].mxu0
    %v200 = vadd.f32 0.0, %v199
    %v201 = vpop.f32.mrb[0].mxu0
    %v202 = vadd.f32 0.0, %v201
    %v203 = vpop.f32.mrb[0].mxu0
    %v204 = vadd.f32 0.0, %v203
    %205 = vmatprep.mubr.bf16.mxu0 0
    %206 = vmatmul.mubr.bf16.gmra.mrb[0].mxu0 %v108
    %v207 = vpop.f32.mrb[0].mxu0
    %v208 = vadd.f32 0.0, %v207
    %v209 = vpop.f32.mrb[0].mxu0
    %v210 = vadd.f32 0.0, %v209
    %v211 = vpop.f32.mrb[0].mxu0
    %v212 = vadd.f32 0.0, %v211
    %v213 = vpop.f32.mrb[0].mxu0
    %v214 = vadd.f32 0.0, %v213
    %215 = vmatprep.mubr.bf16.mxu0 0
    %216 = vmatmul.mubr.bf16.gmra.mrb[0].mxu0 %v111
    %v217 = vpop.f32.mrb[0].mxu0
    %v218 = vadd.f32 0.0, %v217
    %v219 = vpop.f32.mrb[0].mxu0
    %v220 = vadd.f32 0.0, %v219
    %v221 = vpop.f32.mrb[0].mxu0
    %v222 = vadd.f32 0.0, %v221
    %v223 = vpop.f32.mrb[0].mxu0
    %v224 = vadd.f32 0.0, %v223
    %225 = vmatprep.mubr.bf16.mxu0 0
    %226 = vmatmul.mubr.bf16.gmra.mrb[0].mxu0 %v114
    %v227 = vpop.f32.mrb[0].mxu0
    %v228 = vadd.f32 0.0, %v227
    %v229 = vpop.f32.mrb[0].mxu0
    %v230 = vadd.f32 0.0, %v229
    %v231 = vpop.f32.mrb[0].mxu0
    %v232 = vadd.f32 0.0, %v231
    %v233 = vpop.f32.mrb[0].mxu0
    %v234 = vadd.f32 0.0, %v233
    %235 = vdwg.mxu0
    %v238 = vunpack.c.l.b16 %v83
    %v239 = vunpack.c.h.b16 %v83
    %v240 = vunpack.c.l.b16 %v84
    %v241 = vunpack.c.h.b16 %v84
    %v242 = vpack.c.b16 %v240, %v238
    %v243 = vpack.c.b16 %v241, %v239
    %vm246 = vcmask 130048
    %v248 = vsel %vm246, %v51, 0
    %v251 = vsel %vm246, %v52, 0
    %v254 = vsel %vm246, %v53, 0
    %v257 = vsel %vm246, %v54, 0
    %v260 = vsel %vm246, %v55, 0
    %v263 = vsel %vm246, %v56, 0
    %v266 = vsel %vm246, %v57, 0
    %v269 = vsel %vm246, %v58, 0
    %271 = vmatprep.subr.bf16.mxu0 %v243
    %272 = vmatpush1.bf16.msra.mxu0 %v242
    %273 = vmatprep.subr.bf16.mxu0 0
    %274 = vmatpush1.bf16.msra.mxu0 0
    %275 = vmatprep.subr.bf16.mxu0 0
    %276 = vmatpush1.bf16.msra.mxu0 0
    %277 = vmatprep.subr.bf16.mxu0 0
    %278 = vmatpush1.bf16.msra.mxu0 0
    %279 = vmatprep.subr.bf16.mxu0 0
    %280 = vmatpush1.bf16.msra.mxu0 0
    %281 = vmatprep.subr.bf16.mxu0 0
    %282 = vmatpush1.bf16.msra.mxu0 0
    %283 = vmatprep.subr.bf16.mxu0 0
    %284 = vmatpush1.bf16.msra.mxu0 0
    %285 = vmatprep.subr.bf16.mxu0 0
    %286 = vmatpush1.bf16.msra.mxu0 0
    %287 = vmatprep.subr.bf16.mxu0 0
    %288 = vmatpush1.bf16.msra.mxu0 0
    %289 = vmatprep.subr.bf16.mxu0 0
    %290 = vmatpush1.bf16.msra.mxu0 0
    %291 = vmatprep.subr.bf16.mxu0 0
    %292 = vmatpush1.bf16.msra.mxu0 0
    %293 = vmatprep.subr.bf16.mxu0 0
    %294 = vmatpush1.bf16.msra.mxu0 0
    %295 = vmatprep.subr.bf16.mxu0 0
    %296 = vmatpush1.bf16.msra.mxu0 0
    %297 = vmatprep.subr.bf16.mxu0 0
    %298 = vmatpush1.bf16.msra.mxu0 0
    %299 = vmatprep.subr.bf16.mxu0 0
    %300 = vmatpush1.bf16.msra.mxu0 0
    %301 = vmatprep.subr.bf16.mxu0 0
    %302 = vmatpush1.bf16.msra.mxu0 0
    %303 = vmatprep.mubr.bf16.mxu0 0
    %304 = vmatmul.mubr.bf16.gmra.mrb[0].mxu0 %v248
    %v305 = vpop.f32.mrb[0].mxu0
    %v306 = vadd.f32 %v158, %v305
    %v307 = vpop.f32.mrb[0].mxu0
    %v308 = vadd.f32 %v160, %v307
    %v309 = vpop.f32.mrb[0].mxu0
    %v310 = vadd.f32 %v162, %v309
    %v311 = vpop.f32.mrb[0].mxu0
    %v312 = vadd.f32 %v164, %v311
    %313 = vmatprep.mubr.bf16.mxu0 0
    %314 = vmatmul.mubr.bf16.gmra.mrb[0].mxu0 %v251
    %v315 = vpop.f32.mrb[0].mxu0
    %v316 = vadd.f32 %v168, %v315
    %v317 = vpop.f32.mrb[0].mxu0
    %v318 = vadd.f32 %v170, %v317
    %v319 = vpop.f32.mrb[0].mxu0
    %v320 = vadd.f32 %v172, %v319
    %v321 = vpop.f32.mrb[0].mxu0
    %v322 = vadd.f32 %v174, %v321
    %323 = vmatprep.mubr.bf16.mxu0 0
    %324 = vmatmul.mubr.bf16.gmra.mrb[0].mxu0 %v254
    %v325 = vpop.f32.mrb[0].mxu0
    %v326 = vadd.f32 %v178, %v325
    %v327 = vpop.f32.mrb[0].mxu0
    %v328 = vadd.f32 %v180, %v327
    %v329 = vpop.f32.mrb[0].mxu0
    %v330 = vadd.f32 %v182, %v329
    %v331 = vpop.f32.mrb[0].mxu0
    %v332 = vadd.f32 %v184, %v331
    %333 = vmatprep.mubr.bf16.mxu0 0
    %334 = vmatmul.mubr.bf16.gmra.mrb[0].mxu0 %v257
    %v335 = vpop.f32.mrb[0].mxu0
    %v336 = vadd.f32 %v188, %v335
    %v337 = vpop.f32.mrb[0].mxu0
    %v338 = vadd.f32 %v190, %v337
    %v339 = vpop.f32.mrb[0].mxu0
    %v340 = vadd.f32 %v192, %v339
    %v341 = vpop.f32.mrb[0].mxu0
    %v342 = vadd.f32 %v194, %v341
    %343 = vmatprep.mubr.bf16.mxu0 0
    %344 = vmatmul.mubr.bf16.gmra.mrb[0].mxu0 %v260
    %v345 = vpop.f32.mrb[0].mxu0
    %v346 = vadd.f32 %v198, %v345
    %v347 = vpop.f32.mrb[0].mxu0
    %v348 = vadd.f32 %v200, %v347
    %v349 = vpop.f32.mrb[0].mxu0
    %v350 = vadd.f32 %v202, %v349
    %v351 = vpop.f32.mrb[0].mxu0
    %v352 = vadd.f32 %v204, %v351
    %353 = vmatprep.mubr.bf16.mxu0 0
    %354 = vmatmul.mubr.bf16.gmra.mrb[0].mxu0 %v263
    %v355 = vpop.f32.mrb[0].mxu0
    %v356 = vadd.f32 %v208, %v355
    %v357 = vpop.f32.mrb[0].mxu0
    %v358 = vadd.f32 %v210, %v357
    %v359 = vpop.f32.mrb[0].mxu0
    %v360 = vadd.f32 %v212, %v359
    %v361 = vpop.f32.mrb[0].mxu0
    %v362 = vadd.f32 %v214, %v361
    %363 = vmatprep.mubr.bf16.mxu0 0
    %364 = vmatmul.mubr.bf16.gmra.mrb[0].mxu0 %v266
    %v365 = vpop.f32.mrb[0].mxu0
    %v366 = vadd.f32 %v218, %v365
    %v367 = vpop.f32.mrb[0].mxu0
    %v368 = vadd.f32 %v220, %v367
    %v369 = vpop.f32.mrb[0].mxu0
    %v370 = vadd.f32 %v222, %v369
    %v371 = vpop.f32.mrb[0].mxu0
    %v372 = vadd.f32 %v224, %v371
    %373 = vmatprep.mubr.bf16.mxu0 0
    %374 = vmatmul.mubr.bf16.gmra.mrb[0].mxu0 %v269
    %v375 = vpop.f32.mrb[0].mxu0
    %v376 = vadd.f32 %v228, %v375
    %v377 = vpop.f32.mrb[0].mxu0
    %v378 = vadd.f32 %v230, %v377
    %v379 = vpop.f32.mrb[0].mxu0
    %v380 = vadd.f32 %v232, %v379
    %v381 = vpop.f32.mrb[0].mxu0
    %v382 = vadd.f32 %v234, %v381
    %383 = vdwg.mxu0
    %v384 = vld [vmem:[%s4] sm:$0x3]
    %v386 = vlaneseq
    %v387 = vshrl.u32 %v386, 7
    %v388 = vsub.s32 0, %v387
    %v389 = vrot.slane %v384, %v388
    %v390 = vlaneseq
    %v391 = vshrl.u32 %v390, 7
    %v392 = vsub.s32 1, %v391
    %v393 = vrot.slane %v384, %v392
    %v396 = vadd.f32 %v306, %v389
    %v397 = vadd.f32 %v308, %v393
    %v398 = vadd.f32 %v310, %v389
    %v399 = vadd.f32 %v312, %v393
    %v400 = vadd.f32 %v316, %v389
    %v401 = vadd.f32 %v318, %v393
    %v402 = vadd.f32 %v320, %v389
    %v403 = vadd.f32 %v322, %v393
    %v404 = vadd.f32 %v326, %v389
    %v405 = vadd.f32 %v328, %v393
    %v406 = vadd.f32 %v330, %v389
    %v407 = vadd.f32 %v332, %v393
    %v408 = vadd.f32 %v336, %v389
    %v409 = vadd.f32 %v338, %v393
    %v410 = vadd.f32 %v340, %v389
    %v411 = vadd.f32 %v342, %v393
    %v412 = vadd.f32 %v346, %v389
    %v413 = vadd.f32 %v348, %v393
    %v414 = vadd.f32 %v350, %v389
    %v415 = vadd.f32 %v352, %v393
    %v416 = vadd.f32 %v356, %v389
    %v417 = vadd.f32 %v358, %v393
    %v418 = vadd.f32 %v360, %v389
    %v419 = vadd.f32 %v362, %v393
    %v420 = vadd.f32 %v366, %v389
    %v421 = vadd.f32 %v368, %v393
    %v422 = vadd.f32 %v370, %v389
    %v423 = vadd.f32 %v372, %v393
    %v424 = vadd.f32 %v376, %v389
    %v425 = vadd.f32 %v378, %v393
    %v426 = vadd.f32 %v380, %v389
    %v427 = vadd.f32 %v382, %v393
    %v428 = vmax.f32 %v396, 0.0
    %v429 = vmax.f32 %v397, 0.0
    %v430 = vmax.f32 %v398, 0.0
    %v431 = vmax.f32 %v399, 0.0
    %v432 = vmax.f32 %v400, 0.0
    %v433 = vmax.f32 %v401, 0.0
    %v434 = vmax.f32 %v402, 0.0
    %v435 = vmax.f32 %v403, 0.0
    %v436 = vmax.f32 %v404, 0.0
    %v437 = vmax.f32 %v405, 0.0
    %v438 = vmax.f32 %v406, 0.0
    %v439 = vmax.f32 %v407, 0.0
    %v440 = vmax.f32 %v408, 0.0
    %v441 = vmax.f32 %v409, 0.0
    %v442 = vmax.f32 %v410, 0.0
    %v443 = vmax.f32 %v411, 0.0
    %v444 = vmax.f32 %v412, 0.0
    %v445 = vmax.f32 %v413, 0.0
    %v446 = vmax.f32 %v414, 0.0
    %v447 = vmax.f32 %v415, 0.0
    %v448 = vmax.f32 %v416, 0.0
    %v449 = vmax.f32 %v417, 0.0
    %v450 = vmax.f32 %v418, 0.0
    %v451 = vmax.f32 %v419, 0.0
    %v452 = vmax.f32 %v420, 0.0
    %v453 = vmax.f32 %v421, 0.0
    %v454 = vmax.f32 %v422, 0.0
    %v455 = vmax.f32 %v423, 0.0
    %v456 = vmax.f32 %v424, 0.0
    %v457 = vmax.f32 %v425, 0.0
    %v458 = vmax.f32 %v426, 0.0
    %v459 = vmax.f32 %v427, 0.0
    %v460 = vpack.c.bf16 %v430, %v428
    %v461 = vpack.c.bf16 %v431, %v429
    %v462 = vpack.c.bf16 %v434, %v432
    %v463 = vpack.c.bf16 %v435, %v433
    %v464 = vpack.c.bf16 %v438, %v436
    %v465 = vpack.c.bf16 %v439, %v437
    %v466 = vpack.c.bf16 %v442, %v440
    %v467 = vpack.c.bf16 %v443, %v441
    %v468 = vpack.c.bf16 %v446, %v444
    %v469 = vpack.c.bf16 %v447, %v445
    %v470 = vpack.c.bf16 %v450, %v448
    %v471 = vpack.c.bf16 %v451, %v449
    %v472 = vpack.c.bf16 %v454, %v452
    %v473 = vpack.c.bf16 %v455, %v453
    %v474 = vpack.c.bf16 %v458, %v456
    %v475 = vpack.c.bf16 %v459, %v457
    %v476 = vld [vmem:[%s5] sm:$0xff]
    %v477 = vld [vmem:[%s5 + $0x8] sm:$0xff]
    %v478 = vld [vmem:[%s5 + $0x10] sm:$0xff]
    %v479 = vld [vmem:[%s5 + $0x18] sm:$0xff]
    %v480 = vld [vmem:[%s5 + $0x20] sm:$0xff]
    %v481 = vld [vmem:[%s5 + $0x28] sm:$0xff]
    %v482 = vld [vmem:[%s5 + $0x30] sm:$0xff]
    %v483 = vld [vmem:[%s5 + $0x38] sm:$0xff]
    %v484 = vld [vmem:[%s5 + $0x40] sm:$0xff]
    %v485 = vld [vmem:[%s5 + $0x48] sm:$0xff]
    %v486 = vld [vmem:[%s5 + $0x50] sm:$0xff]
    %v487 = vld [vmem:[%s5 + $0x58] sm:$0xff]
    %v488 = vld [vmem:[%s5 + $0x60] sm:$0xff]
    %v489 = vld [vmem:[%s5 + $0x68] sm:$0xff]
    %v490 = vld [vmem:[%s5 + $0x70] sm:$0xff]
    %v491 = vld [vmem:[%s5 + $0x78] sm:$0xff]
    %v492 = vld [vmem:[%s5 + $0x80] sm:$0xff]
    %v493 = vld [vmem:[%s5 + $0x88] sm:$0xff]
    %v494 = vld [vmem:[%s5 + $0x90] sm:$0xff]
    %v495 = vld [vmem:[%s5 + $0x98] sm:$0xff]
    %v496 = vld [vmem:[%s5 + $0xa0] sm:$0xff]
    %v497 = vld [vmem:[%s5 + $0xa8] sm:$0xff]
    %v498 = vld [vmem:[%s5 + $0xb0] sm:$0xff]
    %v499 = vld [vmem:[%s5 + $0xb8] sm:$0xff]
    %v500 = vld [vmem:[%s5 + $0xc0] sm:$0xff]
    %v501 = vld [vmem:[%s5 + $0xc8] sm:$0xff]
    %v502 = vld [vmem:[%s5 + $0xd0] sm:$0xff]
    %v503 = vld [vmem:[%s5 + $0xd8] sm:$0xff]
    %v504 = vld [vmem:[%s5 + $0xe0] sm:$0xff]
    %v505 = vld [vmem:[%s5 + $0xe8] sm:$0xff]
    %v506 = vld [vmem:[%s5 + $0xf0] sm:$0xff]
    %v507 = vld [vmem:[%s5 + $0xf8] sm:$0xff]
    %v508 = vld [vmem:[%s6] sm:$0x3]
    %v510 = vlaneseq
    %v511 = vshrl.u32 %v510, 7
    %v512 = vsub.s32 0, %v511
    %v513 = vrot.slane %v508, %v512
    %v514 = vlaneseq
    %v515 = vshrl.u32 %v514, 7
    %v516 = vsub.s32 1, %v515
    %v517 = vrot.slane %v508, %v516
    %v552 = vunpack.c.l.b16 %v476
    %v553 = vunpack.c.h.b16 %v476
    %v554 = vunpack.c.l.b16 %v477
    %v555 = vunpack.c.h.b16 %v477
    %v556 = vunpack.c.l.b16 %v478
    %v557 = vunpack.c.h.b16 %v478
    %v558 = vunpack.c.l.b16 %v479
    %v559 = vunpack.c.h.b16 %v479
    %v560 = vunpack.c.l.b16 %v480
    %v561 = vunpack.c.h.b16 %v480
    %v562 = vunpack.c.l.b16 %v481
    %v563 = vunpack.c.h.b16 %v481
    %v564 = vunpack.c.l.b16 %v482
    %v565 = vunpack.c.h.b16 %v482
    %v566 = vunpack.c.l.b16 %v483
    %v567 = vunpack.c.h.b16 %v483
    %v568 = vunpack.c.l.b16 %v484
    %v569 = vunpack.c.h.b16 %v484
    %v570 = vunpack.c.l.b16 %v485
    %v571 = vunpack.c.h.b16 %v485
    %v572 = vunpack.c.l.b16 %v486
    %v573 = vunpack.c.h.b16 %v486
    %v574 = vunpack.c.l.b16 %v487
    %v575 = vunpack.c.h.b16 %v487
    %v576 = vunpack.c.l.b16 %v488
    %v577 = vunpack.c.h.b16 %v488
    %v578 = vunpack.c.l.b16 %v489
    %v579 = vunpack.c.h.b16 %v489
    %v580 = vunpack.c.l.b16 %v490
    %v581 = vunpack.c.h.b16 %v490
    %v582 = vunpack.c.l.b16 %v491
    %v583 = vunpack.c.h.b16 %v491
    %v584 = vunpack.c.l.b16 %v492
    %v585 = vunpack.c.h.b16 %v492
    %v586 = vunpack.c.l.b16 %v493
    %v587 = vunpack.c.h.b16 %v493
    %v588 = vunpack.c.l.b16 %v494
    %v589 = vunpack.c.h.b16 %v494
    %v590 = vunpack.c.l.b16 %v495
    %v591 = vunpack.c.h.b16 %v495
    %v592 = vunpack.c.l.b16 %v496
    %v593 = vunpack.c.h.b16 %v496
    %v594 = vunpack.c.l.b16 %v497
    %v595 = vunpack.c.h.b16 %v497
    %v596 = vunpack.c.l.b16 %v498
    %v597 = vunpack.c.h.b16 %v498
    %v598 = vunpack.c.l.b16 %v499
    %v599 = vunpack.c.h.b16 %v499
    %v600 = vunpack.c.l.b16 %v500
    %v601 = vunpack.c.h.b16 %v500
    %v602 = vunpack.c.l.b16 %v501
    %v603 = vunpack.c.h.b16 %v501
    %v604 = vunpack.c.l.b16 %v502
    %v605 = vunpack.c.h.b16 %v502
    %v606 = vunpack.c.l.b16 %v503
    %v607 = vunpack.c.h.b16 %v503
    %v608 = vunpack.c.l.b16 %v504
    %v609 = vunpack.c.h.b16 %v504
    %v610 = vunpack.c.l.b16 %v505
    %v611 = vunpack.c.h.b16 %v505
    %v612 = vunpack.c.l.b16 %v506
    %v613 = vunpack.c.h.b16 %v506
    %v614 = vunpack.c.l.b16 %v507
    %v615 = vunpack.c.h.b16 %v507
    %v616 = vpack.c.b16 %v554, %v552
    %v617 = vpack.c.b16 %v555, %v553
    %v618 = vpack.c.b16 %v558, %v556
    %v619 = vpack.c.b16 %v559, %v557
    %v620 = vpack.c.b16 %v562, %v560
    %v621 = vpack.c.b16 %v563, %v561
    %v622 = vpack.c.b16 %v566, %v564
    %v623 = vpack.c.b16 %v567, %v565
    %v624 = vpack.c.b16 %v570, %v568
    %v625 = vpack.c.b16 %v571, %v569
    %v626 = vpack.c.b16 %v574, %v572
    %v627 = vpack.c.b16 %v575, %v573
    %v628 = vpack.c.b16 %v578, %v576
    %v629 = vpack.c.b16 %v579, %v577
    %v630 = vpack.c.b16 %v582, %v580
    %v631 = vpack.c.b16 %v583, %v581
    %v632 = vpack.c.b16 %v586, %v584
    %v633 = vpack.c.b16 %v587, %v585
    %v634 = vpack.c.b16 %v590, %v588
    %v635 = vpack.c.b16 %v591, %v589
    %v636 = vpack.c.b16 %v594, %v592
    %v637 = vpack.c.b16 %v595, %v593
    %v638 = vpack.c.b16 %v598, %v596
    %v639 = vpack.c.b16 %v599, %v597
    %v640 = vpack.c.b16 %v602, %v600
    %v641 = vpack.c.b16 %v603, %v601
    %v642 = vpack.c.b16 %v606, %v604
    %v643 = vpack.c.b16 %v607, %v605
    %v644 = vpack.c.b16 %v610, %v608
    %v645 = vpack.c.b16 %v611, %v609
    %v646 = vpack.c.b16 %v614, %v612
    %v647 = vpack.c.b16 %v615, %v613
    %680 = vmatprep.subr.bf16.mxu0 %v617
    %681 = vmatpush1.bf16.msra.mxu0 %v616
    %682 = vmatprep.subr.bf16.mxu0 %v619
    %683 = vmatpush1.bf16.msra.mxu0 %v618
    %684 = vmatprep.subr.bf16.mxu0 %v621
    %685 = vmatpush1.bf16.msra.mxu0 %v620
    %686 = vmatprep.subr.bf16.mxu0 %v623
    %687 = vmatpush1.bf16.msra.mxu0 %v622
    %688 = vmatprep.subr.bf16.mxu0 %v625
    %689 = vmatpush1.bf16.msra.mxu0 %v624
    %690 = vmatprep.subr.bf16.mxu0 %v627
    %691 = vmatpush1.bf16.msra.mxu0 %v626
    %692 = vmatprep.subr.bf16.mxu0 %v629
    %693 = vmatpush1.bf16.msra.mxu0 %v628
    %694 = vmatprep.subr.bf16.mxu0 %v631
    %695 = vmatpush1.bf16.msra.mxu0 %v630
    %696 = vmatprep.subr.bf16.mxu0 %v633
    %697 = vmatpush1.bf16.msra.mxu0 %v632
    %698 = vmatprep.subr.bf16.mxu0 %v635
    %699 = vmatpush1.bf16.msra.mxu0 %v634
    %700 = vmatprep.subr.bf16.mxu0 %v637
    %701 = vmatpush1.bf16.msra.mxu0 %v636
    %702 = vmatprep.subr.bf16.mxu0 %v639
    %703 = vmatpush1.bf16.msra.mxu0 %v638
    %704 = vmatprep.subr.bf16.mxu0 %v641
    %705 = vmatpush1.bf16.msra.mxu0 %v640
    %706 = vmatprep.subr.bf16.mxu0 %v643
    %707 = vmatpush1.bf16.msra.mxu0 %v642
    %708 = vmatprep.subr.bf16.mxu0 %v645
    %709 = vmatpush1.bf16.msra.mxu0 %v644
    %710 = vmatprep.subr.bf16.mxu0 %v647
    %711 = vmatpush1.bf16.msra.mxu0 %v646
    %712 = vmatprep.mubr.bf16.mxu0 %v461
    %713 = vmatmul.mubr.bf16.gmra.mrb[0].mxu0 %v460
    %v714 = vpop.f32.mrb[0].mxu0
    %v715 = vadd.f32 %v513, %v714
    %v716 = vpop.f32.mrb[0].mxu0
    %v717 = vadd.f32 %v517, %v716
    %v718 = vpop.f32.mrb[0].mxu0
    %v719 = vadd.f32 %v513, %v718
    %v720 = vpop.f32.mrb[0].mxu0
    %v721 = vadd.f32 %v517, %v720
    %722 = vmatprep.mubr.bf16.mxu0 %v463
    %723 = vmatmul.mubr.bf16.gmra.mrb[0].mxu0 %v462
    %v724 = vpop.f32.mrb[0].mxu0
    %v725 = vadd.f32 %v513, %v724
    %v726 = vpop.f32.mrb[0].mxu0
    %v727 = vadd.f32 %v517, %v726
    %v728 = vpop.f32.mrb[0].mxu0
    %v729 = vadd.f32 %v513, %v728
    %v730 = vpop.f32.mrb[0].mxu0
    %v731 = vadd.f32 %v517, %v730
    %732 = vmatprep.mubr.bf16.mxu0 %v465
    %733 = vmatmul.mubr.bf16.gmra.mrb[0].mxu0 %v464
    %v734 = vpop.f32.mrb[0].mxu0
    %v735 = vadd.f32 %v513, %v734
    %v736 = vpop.f32.mrb[0].mxu0
    %v737 = vadd.f32 %v517, %v736
    %v738 = vpop.f32.mrb[0].mxu0
    %v739 = vadd.f32 %v513, %v738
    %v740 = vpop.f32.mrb[0].mxu0
    %v741 = vadd.f32 %v517, %v740
    %742 = vmatprep.mubr.bf16.mxu0 %v467
    %743 = vmatmul.mubr.bf16.gmra.mrb[0].mxu0 %v466
    %v744 = vpop.f32.mrb[0].mxu0
    %v745 = vadd.f32 %v513, %v744
    %v746 = vpop.f32.mrb[0].mxu0
    %v747 = vadd.f32 %v517, %v746
    %v748 = vpop.f32.mrb[0].mxu0
    %v749 = vadd.f32 %v513, %v748
    %v750 = vpop.f32.mrb[0].mxu0
    %v751 = vadd.f32 %v517, %v750
    %752 = vmatprep.mubr.bf16.mxu0 %v469
    %753 = vmatmul.mubr.bf16.gmra.mrb[0].mxu0 %v468
    %v754 = vpop.f32.mrb[0].mxu0
    %v755 = vadd.f32 %v513, %v754
    %v756 = vpop.f32.mrb[0].mxu0
    %v757 = vadd.f32 %v517, %v756
    %v758 = vpop.f32.mrb[0].mxu0
    %v759 = vadd.f32 %v513, %v758
    %v760 = vpop.f32.mrb[0].mxu0
    %v761 = vadd.f32 %v517, %v760
    %762 = vmatprep.mubr.bf16.mxu0 %v471
    %763 = vmatmul.mubr.bf16.gmra.mrb[0].mxu0 %v470
    %v764 = vpop.f32.mrb[0].mxu0
    %v765 = vadd.f32 %v513, %v764
    %v766 = vpop.f32.mrb[0].mxu0
    %v767 = vadd.f32 %v517, %v766
    %v768 = vpop.f32.mrb[0].mxu0
    %v769 = vadd.f32 %v513, %v768
    %v770 = vpop.f32.mrb[0].mxu0
    %v771 = vadd.f32 %v517, %v770
    %772 = vmatprep.mubr.bf16.mxu0 %v473
    %773 = vmatmul.mubr.bf16.gmra.mrb[0].mxu0 %v472
    %v774 = vpop.f32.mrb[0].mxu0
    %v775 = vadd.f32 %v513, %v774
    %v776 = vpop.f32.mrb[0].mxu0
    %v777 = vadd.f32 %v517, %v776
    %v778 = vpop.f32.mrb[0].mxu0
    %v779 = vadd.f32 %v513, %v778
    %v780 = vpop.f32.mrb[0].mxu0
    %v781 = vadd.f32 %v517, %v780
    %782 = vmatprep.mubr.bf16.mxu0 %v475
    %783 = vmatmul.mubr.bf16.gmra.mrb[0].mxu0 %v474
    %v784 = vpop.f32.mrb[0].mxu0
    %v785 = vadd.f32 %v513, %v784
    %v786 = vpop.f32.mrb[0].mxu0
    %v787 = vadd.f32 %v517, %v786
    %v788 = vpop.f32.mrb[0].mxu0
    %v789 = vadd.f32 %v513, %v788
    %v790 = vpop.f32.mrb[0].mxu0
    %v791 = vadd.f32 %v517, %v790
    %792 = vdwg.mxu0
    %v793 = vmax.f32 %v715, 0.0
    %v794 = vmax.f32 %v717, 0.0
    %v795 = vmax.f32 %v719, 0.0
    %v796 = vmax.f32 %v721, 0.0
    %v797 = vmax.f32 %v725, 0.0
    %v798 = vmax.f32 %v727, 0.0
    %v799 = vmax.f32 %v729, 0.0
    %v800 = vmax.f32 %v731, 0.0
    %v801 = vmax.f32 %v735, 0.0
    %v802 = vmax.f32 %v737, 0.0
    %v803 = vmax.f32 %v739, 0.0
    %v804 = vmax.f32 %v741, 0.0
    %v805 = vmax.f32 %v745, 0.0
    %v806 = vmax.f32 %v747, 0.0
    %v807 = vmax.f32 %v749, 0.0
    %v808 = vmax.f32 %v751, 0.0
    %v809 = vmax.f32 %v755, 0.0
    %v810 = vmax.f32 %v757, 0.0
    %v811 = vmax.f32 %v759, 0.0
    %v812 = vmax.f32 %v761, 0.0
    %v813 = vmax.f32 %v765, 0.0
    %v814 = vmax.f32 %v767, 0.0
    %v815 = vmax.f32 %v769, 0.0
    %v816 = vmax.f32 %v771, 0.0
    %v817 = vmax.f32 %v775, 0.0
    %v818 = vmax.f32 %v777, 0.0
    %v819 = vmax.f32 %v779, 0.0
    %v820 = vmax.f32 %v781, 0.0
    %v821 = vmax.f32 %v785, 0.0
    %v822 = vmax.f32 %v787, 0.0
    %v823 = vmax.f32 %v789, 0.0
    %v824 = vmax.f32 %v791, 0.0
    %v825 = vld [vmem:[%s7] sm:$0x3]
    %s826 = sld [smem:[#allocation2]]
    %v827 = vstv %s826
    %v829 = vlaneseq
    %v830 = vshrl.u32 %v829, 7
    %v831 = vsub.s32 0, %v830
    %v832 = vrot.slane %v825, %v831
    %v833 = vlaneseq
    %v834 = vshrl.u32 %v833, 7
    %v835 = vsub.s32 1, %v834
    %v836 = vrot.slane %v825, %v835
    %839 = vmatprep.subr.mxu0 %v794
    %840 = vmatpush1.xpose.msra.mxu0 %v793
    %841 = vmatprep.subr.mxu0 %v796
    %842 = vmatpush1.xpose.msra.mxu0 %v795
    %843 = vmatprep.subr.mxu0 %v798
    %844 = vmatpush1.xpose.msra.mxu0 %v797
    %845 = vmatprep.subr.mxu0 %v800
    %846 = vmatpush1.xpose.msra.mxu0 %v799
    %847 = vmatprep.subr.mxu0 %v802
    %848 = vmatpush1.xpose.msra.mxu0 %v801
    %849 = vmatprep.subr.mxu0 %v804
    %850 = vmatpush1.xpose.msra.mxu0 %v803
    %851 = vmatprep.subr.mxu0 %v806
    %852 = vmatpush1.xpose.msra.mxu0 %v805
    %853 = vmatprep.subr.mxu0 %v808
    %854 = vmatpush1.xpose.msra.mxu0 %v807
    %855 = vmatprep.subr.mxu0 %v810
    %856 = vmatpush1.xpose.msra.mxu0 %v809
    %857 = vmatprep.subr.mxu0 %v812
    %858 = vmatpush1.xpose.msra.mxu0 %v811
    %859 = vmatprep.subr.mxu0 %v814
    %860 = vmatpush1.xpose.msra.mxu0 %v813
    %861 = vmatprep.subr.mxu0 %v816
    %862 = vmatpush1.xpose.msra.mxu0 %v815
    %863 = vmatprep.subr.mxu0 %v818
    %864 = vmatpush1.xpose.msra.mxu0 %v817
    %865 = vmatprep.subr.mxu0 %v820
    %866 = vmatpush1.xpose.msra.mxu0 %v819
    %867 = vmatprep.subr.mxu0 %v822
    %868 = vmatpush1.xpose.msra.mxu0 %v821
    %869 = vmatprep.subr.mxu0 %v824
    %870 = vmatpush1.xpose.msra.mxu0 %v823
    %871 = vmatprep.subr.mxu0 0.0
    %872 = vmatpush1.xpose.msra.mxu0 0.0
    %873 = vmatprep.subr.mxu0 0.0
    %874 = vmatpush1.xpose.msra.mxu0 0.0
    %875 = vmatprep.subr.mxu0 0.0
    %876 = vmatpush1.xpose.msra.mxu0 0.0
    %877 = vmatprep.subr.mxu0 0.0
    %878 = vmatpush1.xpose.msra.mxu0 0.0
    %879 = vmatprep.subr.mxu0 0.0
    %880 = vmatpush1.xpose.msra.mxu0 0.0
    %881 = vmatprep.subr.mxu0 0.0
    %882 = vmatpush1.xpose.msra.mxu0 0.0
    %883 = vmatprep.subr.mxu0 0.0
    %884 = vmatpush1.xpose.msra.mxu0 0.0
    %885 = vmatprep.subr.mxu0 0.0
    %886 = vmatpush1.xpose.msra.mxu0 0.0
    %887 = vmatprep.subr.mxu0 0.0
    %888 = vmatpush1.xpose.msra.mxu0 0.0
    %889 = vmatprep.subr.mxu0 0.0
    %890 = vmatpush1.xpose.msra.mxu0 0.0
    %891 = vmatprep.subr.mxu0 0.0
    %892 = vmatpush1.xpose.msra.mxu0 0.0
    %893 = vmatprep.subr.mxu0 0.0
    %894 = vmatpush1.xpose.msra.mxu0 0.0
    %895 = vmatprep.subr.mxu0 0.0
    %896 = vmatpush1.xpose.msra.mxu0 0.0
    %897 = vmatprep.subr.mxu0 0.0
    %898 = vmatpush1.xpose.msra.mxu0 0.0
    %899 = vmatprep.subr.mxu0 0.0
    %900 = vmatpush1.xpose.msra.mxu0 0.0
    %901 = vmatprep.subr.mxu0 0.0
    %902 = vmatpush1.xpose.msra.mxu0 0.0
    %903 = vmatprep.mubr.f32.mxu0 %v836
    %904 = vmatmul.mubr.f32.gmra.mrb[0].mxu0 %v832
    %v905 = vpop.f32.mrb[0].mxu0
    %v906 = vadd.f32 %v827, %v905
    %v907 = vpop.f32.mrb[0].mxu0
    %908 = vdwg.mxu0
    %909 = vst [vmem:[#allocation3] sm:$0x1] %v906
    // Predicated region
    $region38: #{tpu_custom_call.1} parent=1 // pred_check
      _
    $region39: #{tpu_custom_call.1} parent=1 // pred_check_branch
      %911 = sbr.rel (0) target = $region41
    $region40: #{tpu_custom_call.1} parent=1 // pred_region
      %s913 = ssub.s32 16, 16
      %914 = vsyncadd [#allocation4], %s913
      %s916 = sshll.u32 [#allocation3], 4
      %s917 = int_to_ptr.vmem [resolvable:$true] %s916
      %919 = dma.vmem_to_hbm [thread:$0]  %s917, 16, %s9, [#allocation4]
    $region41: #{tpu_custom_call.1} parent=1 // pred_fallthru
      _
    // Predicated region
    $region42: #{tpu_custom_call.1} parent=1 // pred_check
      _
    $region43: #{tpu_custom_call.1} parent=1 // pred_check_branch
      %921 = sbr.rel (0) target = $region45
    $region44: #{tpu_custom_call.1} parent=1 // pred_region
      %922 = dma.done [#allocation4], 16
    $region45: #{tpu_custom_call.1} parent=1 // pred_fallthru
      _
    %923 = vsyncpa [#allocation4], 1

</llo_original>
